<compile_context>
chip_gen: v7x
topology: tpu7x:2x2x1
jax: 0.10.0
libtpu: 0.0.40
codegen_flags: <defaults>
</compile_context>

<pallas_src>
import jax
import jax.numpy as jnp
from jax.experimental import pallas as pl
from jax.experimental.pallas import tpu as pltpu

_LANE = 128          # vreg lane width
_BF16_SUBLANE = 16   # bf16 sublane packing


def _round_up(x, m):
    return ((x + m - 1) // m) * m


def _vmem_capacity_bytes():
    try:
        return int(pltpu.get_tpu_info().vmem_capacity_bytes)
    except Exception:
        return 64 * 1024 * 1024  # conservative: v7x per-TC VMEM


def _num_tensorcores_per_chip():
    # v7x has 2 TensorCores per chip; v5e/v6e have 1.
    try:
        kind = jax.devices()[0].device_kind.lower()
        if "v7" in kind:
            return 2
    except Exception:
        pass
    return 1


def mlp_kernel(x_ref, w1_ref, b1_ref, w2_ref, b2_ref, o_ref, acc_ref):
    # grid = (batch_tiles, k_tiles); axis 1 is a reduction over D_in (K).
    k = pl.program_id(1)

    @pl.when(k == 0)
    def _init():
        acc_ref[...] = jnp.zeros_like(acc_ref)

    # fc1 partial product on the MXU (bf16 in, f32 accumulate).
    acc_ref[...] += jnp.dot(
        x_ref[...], w1_ref[...], preferred_element_type=jnp.float32
    )

    @pl.when(k == pl.num_programs(1) - 1)
    def _finalize():
        # bias + ReLU (VPU), fc2 on the MXU, bias, lane-dense bf16 store.
        h = jnp.maximum(acc_ref[...] + b1_ref[...], 0.0)
        y = jnp.dot(
            h.astype(w2_ref.dtype), w2_ref[...], preferred_element_type=jnp.float32
        ) + b2_ref[...]
        o_ref[...] = y.astype(o_ref.dtype)


def prepack_mlp_params(w1, b1, w2, b2, *, k_tile=4096):
    """One-time weight preparation: cast to bf16, zero-pad to lane/MXU shapes.

    Hoist this out of the per-call path: the kernel already streams W1 from HBM
    each call; re-padding W1 per call would roughly double HBM traffic.
    Zero padding is exact for matmul + ReLU.
    """
    D_in, D_hid = w1.shape
    D_out = w2.shape[1]

    H = _round_up(max(D_hid, 1), _LANE)   # hidden: e.g. 100 -> 128
    O = _round_up(max(D_out, 1), _LANE)   # output: e.g. 4 -> 128 (lane-dense store)

    # K (reduction over D_in): single step when the padded K fits one tile,
    # else pad K to a multiple of the tile so the W1 working set stays bounded.
    tk = max(_LANE, _round_up(int(k_tile), _LANE))
    K = _round_up(D_in, _LANE)
    if K <= tk:
        tk = K
    else:
        K = _round_up(K, tk)

    f32, bf16 = jnp.float32, jnp.bfloat16
    w1p = jnp.zeros((K, H), bf16).at[:D_in, :D_hid].set(w1.astype(bf16))
    b1p = jnp.zeros((1, H), f32).at[:, :D_hid].set(jnp.reshape(b1, (1, -1)).astype(f32))
    w2p = jnp.zeros((H, O), bf16).at[:D_hid, :D_out].set(w2.astype(bf16))
    b2p = jnp.zeros((1, O), f32).at[:, :D_out].set(jnp.reshape(b2, (1, -1)).astype(f32))

    return dict(w1=w1p, b1=b1p, w2=w2p, b2=b2p,
                D_in=D_in, D_hid=D_hid, D_out=D_out,
                K=K, H=H, O=O, tk=tk)


def mlp_forward_prepacked(x, pack, *, batch_tile=None):
    """y = relu(x @ w1 + b1) @ w2 + b2 with prepacked (padded bf16) weights."""
    B, D_in = x.shape
    assert D_in == pack["D_in"], "feature dim mismatch with prepacked weights"
    K, H, O, tk = pack["K"], pack["H"], pack["O"], pack["tk"]

    # ---- batch tile: whole padded batch as one tile (streams W1 exactly once)
    # unless the user overrides, or a 2-TC chip wants two tiles for megacore.
    Bp = _round_up(B, _BF16_SUBLANE)
    if batch_tile is not None:
        tm = max(_BF16_SUBLANE, _round_up(int(batch_tile), _BF16_SUBLANE))
    elif _num_tensorcores_per_chip() >= 2 and Bp >= 512:
        tm = _round_up(pl.cdiv(Bp, 2), _BF16_SUBLANE)   # 2 tiles -> both TCs busy
    else:
        tm = min(Bp, 2048)

    # ---- VMEM budget (generation-aware): shrink tk first (keeps a single W1
    # stream per batch tile), then tm.
    budget = int(_vmem_capacity_bytes() * 0.7)

    def _usage(tm_, tk_):
        return (2 * tm_ * tk_ * 2        # x tile, double-buffered, bf16
                + 2 * tk_ * H * 2        # W1 tile, double-buffered, bf16
                + 2 * H * O * 2          # W2 (resident, double-buffered), bf16
                + 2 * (H + O) * 4        # biases, f32
                + 2 * tm_ * O * 2        # output tile, double-buffered, bf16
                + tm_ * H * 4)           # f32 accumulator scratch

    while _usage(tm, tk) > budget and tk > 512 and tk % 256 == 0:
        tk //= 2                          # halving keeps tk | K and 128-multiple
    while _usage(tm, tk) > budget and tm > 256:
        tm = max(_BF16_SUBLANE, _round_up(tm // 2, _BF16_SUBLANE))

    Bp = _round_up(Bp, tm)
    vmem_limit = int(min(budget, max(32 << 20, _usage(tm, tk) + (4 << 20))))

    # ---- pad activations only (weights already prepacked).
    bf16 = jnp.bfloat16
    xb = jnp.zeros((Bp, K), bf16).at[:B, :D_in].set(x.astype(bf16))

    grid = (Bp // tm, K // tk)   # reduction axis last, marked "arbitrary"

    out = pl.pallas_call(
        mlp_kernel,
        out_shape=jax.ShapeDtypeStruct((Bp, O), bf16),
        grid_spec=pltpu.PrefetchScalarGridSpec(
            num_scalar_prefetch=0,
            grid=grid,
            in_specs=[
                pl.BlockSpec((tm, tk), lambda i, k: (i, k)),   # x   (batch, K tiles)
                pl.BlockSpec((tk, H), lambda i, k: (k, 0)),    # W1  (K-tiled)
                pl.BlockSpec((1, H), lambda i, k: (0, 0)),     # b1  (constant block)
                pl.BlockSpec((H, O), lambda i, k: (0, 0)),     # W2  (resident)
                pl.BlockSpec((1, O), lambda i, k: (0, 0)),     # b2  (constant block)
            ],
            out_specs=pl.BlockSpec((tm, O), lambda i, k: (i, 0)),
            scratch_shapes=[pltpu.VMEM((tm, H), jnp.float32)],  # fc1 accumulator
        ),
        compiler_params=pltpu.CompilerParams(
            dimension_semantics=("parallel", "arbitrary"),
            vmem_limit_bytes=vmem_limit,
        ),
    )(xb, pack["w1"], pack["b1"], pack["w2"], pack["b2"])

    # Slice batch / class padding back off; return f32 logits (module semantics).
    return out[:B, :pack["D_out"]].astype(jnp.float32)


def mlp_forward(x, w1, b1, w2, b2, *, k_tile=4096, batch_tile=None):
    """Convenience one-shot path. For repeated calls, hoist prepack_mlp_params()
    out of the loop and call mlp_forward_prepacked directly."""
    pack = prepack_mlp_params(w1, b1, w2, b2, k_tile=k_tile)
    return mlp_forward_prepacked(x, pack, batch_tile=batch_tile)


if __name__ == "__main__":
    # Small shapes consistent with the module: TF-IDF feature dim (input_dim),
    # hidden_dim=100 as in the reference, small number of classes.
    batch, input_dim, hidden_dim, output_dim = 16, 300, 100, 4

    key = jax.random.PRNGKey(0)
    kx, kw1, kb1, kw2, kb2 = jax.random.split(key, 5)

    x = jax.random.normal(kx, (batch, input_dim), dtype=jnp.float32)
    # nn.Linear-style init bounds (uniform in +/- 1/sqrt(fan_in)), deterministic.
    lim1 = 1.0 / (input_dim ** 0.5)
    lim2 = 1.0 / (hidden_dim ** 0.5)
    w1 = jax.random.uniform(kw1, (input_dim, hidden_dim), jnp.float32, -lim1, lim1)
    b1 = jax.random.uniform(kb1, (hidden_dim,), jnp.float32, -lim1, lim1)
    w2 = jax.random.uniform(kw2, (hidden_dim, output_dim), jnp.float32, -lim2, lim2)
    b2 = jax.random.uniform(kb2, (output_dim,), jnp.float32, -lim2, lim2)

    # Prepack once (hoisted out of the per-call path). k_tile=128 here just to
    # exercise the K-reduction/accumulator path at these small shapes
    # (300 -> 384 padded -> 3 reduction steps).
    pack = prepack_mlp_params(w1, b1, w2, b2, k_tile=128)
    out = mlp_forward_prepacked(x, pack)
    out = jax.block_until_ready(out)
    assert out.shape == (batch, output_dim)

    # Reference 1: same bf16-input / f32-accumulate / bf16-store path in pure JAX.
    xb, w1b, w2b = (a.astype(jnp.bfloat16) for a in (x, w1, w2))
    h_ref = jnp.maximum(
        jnp.dot(xb, w1b, preferred_element_type=jnp.float32) + b1[None, :], 0.0
    )
    ref_bf16 = jnp.dot(
        h_ref.astype(jnp.bfloat16), w2b, preferred_element_type=jnp.float32
    ) + b2[None, :]
    ref_q = ref_bf16.astype(jnp.bfloat16).astype(jnp.float32)  # kernel stores bf16
    assert jnp.allclose(out, ref_q, atol=1e-2, rtol=1e-2)

    # Reference 2: full-f32 forward, loose tolerance for the bf16 casts.
    ref_f32 = jnp.maximum(x @ w1 + b1[None, :], 0.0) @ w2 + b2[None, :]
    assert jnp.allclose(out, ref_f32, atol=5e-2, rtol=5e-2)

    # Default large-tile path too (single K step, whole-batch tile).
    out2 = jax.block_until_ready(mlp_forward(x, w1, b1, w2, b2))
    assert jnp.allclose(out2, ref_q, atol=1e-2, rtol=1e-2)

    print("KERNEL_OK")
</pallas_src>

<mosaic_0001>
module attributes {stable_mosaic.version = 11 : i64} {
  func.func @mlp_kernel(%arg0: i32, %arg1: i32, %arg2: memref<16x128xbf16, #tpu.memory_space<vmem>>, %arg3: memref<128x128xbf16, #tpu.memory_space<vmem>>, %arg4: memref<1x128xf32, #tpu.memory_space<vmem>>, %arg5: memref<128x128xbf16, #tpu.memory_space<vmem>>, %arg6: memref<1x128xf32, #tpu.memory_space<vmem>>, %arg7: memref<16x128xbf16, #tpu.memory_space<vmem>>, %arg8: memref<16x128xf32, #tpu.memory_space<vmem>>) attributes {dimension_semantics = [#tpu.dimension_semantics<parallel>, #tpu.dimension_semantics<arbitrary>], iteration_bounds = array<i64: 1, 3>, scalar_prefetch = 0 : i64, scratch_operands = 1 : i64, tpu.core_type = #tpu.core_type<tc>, window_params = [{transform_indices = @transform_0, window_bounds = array<i64: 16, 128>}, {transform_indices = @transform_1, window_bounds = array<i64: 128, 128>}, {pipeline_mode = #tpu.pipeline_mode<synchronous>, transform_indices = @transform_2, window_bounds = array<i64: 1, 128>}, {pipeline_mode = #tpu.pipeline_mode<synchronous>, transform_indices = @transform_3, window_bounds = array<i64: 128, 128>}, {pipeline_mode = #tpu.pipeline_mode<synchronous>, transform_indices = @transform_4, window_bounds = array<i64: 1, 128>}, {transform_indices = @transform_5, window_bounds = array<i64: 16, 128>}]} {
    %c0_i32 = arith.constant 0 : i32
    %0 = arith.cmpi eq, %arg1, %c0_i32 : i32
    %1 = arith.extui %0 : i1 to i32
    %c0_i32_0 = arith.constant 0 : i32
    %2 = arith.cmpi ne, %1, %c0_i32_0 : i32
    scf.if %2 {
      %cst_9 = arith.constant 0.000000e+00 : f32
      %12 = vector.broadcast %cst_9 : f32 to vector<16x128xf32>
      %c0_10 = arith.constant 0 : index
      %c0_11 = arith.constant 0 : index
      %13 = vector.load %arg8[%c0_10, %c0_11] : memref<16x128xf32, #tpu.memory_space<vmem>>, vector<16x128xf32>
      tpu.vector_store %arg8[%c0_10, %c0_11], %12 {strides = array<i32>} : memref<16x128xf32, #tpu.memory_space<vmem>>, vector<16x128xf32>,
    } else {
    }
    %c0 = arith.constant 0 : index
    %c0_1 = arith.constant 0 : index
    %3 = vector.load %arg8[%c0, %c0_1] : memref<16x128xf32, #tpu.memory_space<vmem>>, vector<16x128xf32>
    %c0_2 = arith.constant 0 : index
    %c0_3 = arith.constant 0 : index
    %4 = vector.load %arg2[%c0_2, %c0_3] : memref<16x128xbf16, #tpu.memory_space<vmem>>, vector<16x128xbf16>
    %c0_4 = arith.constant 0 : index
    %c0_5 = arith.constant 0 : index
    %5 = vector.load %arg3[%c0_4, %c0_5] : memref<128x128xbf16, #tpu.memory_space<vmem>>, vector<128x128xbf16>
    %cst = arith.constant dense<0.000000e+00> : vector<16x128xf32>
    %6 = tpu.matmul %4, %5, %cst {dimension_numbers = #tpu.dot_dimension_numbers<[1], [0], [0], [1], [0, 0, 1, 1], [], []>} : vector<16x128xbf16>, vector<128x128xbf16>, vector<16x128xf32> -> vector<16x128xf32>
    %7 = arith.addf %3, %6 : vector<16x128xf32>
    %c0_6 = arith.constant 0 : index
    %c0_7 = arith.constant 0 : index
    %8 = vector.load %arg8[%c0_6, %c0_7] : memref<16x128xf32, #tpu.memory_space<vmem>>, vector<16x128xf32>
    tpu.vector_store %arg8[%c0_6, %c0_7], %7 {strides = array<i32>} : memref<16x128xf32, #tpu.memory_space<vmem>>, vector<16x128xf32>,
    %c2_i32 = arith.constant 2 : i32
    %9 = arith.cmpi eq, %arg1, %c2_i32 : i32
    %10 = arith.extui %9 : i1 to i32
    %c0_i32_8 = arith.constant 0 : i32
    %11 = arith.cmpi ne, %10, %c0_i32_8 : i32
    scf.if %11 {
      %c0_9 = arith.constant 0 : index
      %c0_10 = arith.constant 0 : index
      %12 = vector.load %arg8[%c0_9, %c0_10] : memref<16x128xf32, #tpu.memory_space<vmem>>, vector<16x128xf32>
      %c0_11 = arith.constant 0 : index
      %c0_12 = arith.constant 0 : index
      %13 = vector.load %arg4[%c0_11, %c0_12] : memref<1x128xf32, #tpu.memory_space<vmem>>, vector<1x128xf32>
      %14 = vector.broadcast %13 : vector<1x128xf32> to vector<16x128xf32>
      %15 = arith.addf %12, %14 : vector<16x128xf32>
      %cst_13 = arith.constant 0.000000e+00 : f32
      %16 = vector.broadcast %cst_13 : f32 to vector<16x128xf32>
      %17 = arith.maximumf %15, %16 : vector<16x128xf32>
      %18 = arith.truncf %17 : vector<16x128xf32> to vector<16x128xbf16>
      %c0_14 = arith.constant 0 : index
      %c0_15 = arith.constant 0 : index
      %19 = vector.load %arg5[%c0_14, %c0_15] : memref<128x128xbf16, #tpu.memory_space<vmem>>, vector<128x128xbf16>
      %cst_16 = arith.constant dense<0.000000e+00> : vector<16x128xf32>
      %20 = tpu.matmul %18, %19, %cst_16 {dimension_numbers = #tpu.dot_dimension_numbers<[1], [0], [0], [1], [0, 0, 1, 1], [], []>} : vector<16x128xbf16>, vector<128x128xbf16>, vector<16x128xf32> -> vector<16x128xf32>
      %c0_17 = arith.constant 0 : index
      %c0_18 = arith.constant 0 : index
      %21 = vector.load %arg6[%c0_17, %c0_18] : memref<1x128xf32, #tpu.memory_space<vmem>>, vector<1x128xf32>
      %22 = vector.broadcast %21 : vector<1x128xf32> to vector<16x128xf32>
      %23 = arith.addf %20, %22 : vector<16x128xf32>
      %24 = arith.truncf %23 : vector<16x128xf32> to vector<16x128xbf16>
      %c0_19 = arith.constant 0 : index
      %c0_20 = arith.constant 0 : index
      %25 = vector.load %arg7[%c0_19, %c0_20] : memref<16x128xbf16, #tpu.memory_space<vmem>>, vector<16x128xbf16>
      tpu.vector_store %arg7[%c0_19, %c0_20], %24 {strides = array<i32>} : memref<16x128xbf16, #tpu.memory_space<vmem>>, vector<16x128xbf16>,
    } else {
    }
    return
  }
  func.func @transform_0(%arg0: i32, %arg1: i32) -> (i32, i32) {
    %c0_i32 = arith.constant 0 : i32
    return %arg0, %arg1 : i32, i32
  }
  func.func @transform_1(%arg0: i32, %arg1: i32) -> (i32, i32) {
    %c0_i32 = arith.constant 0 : i32
    %c0_i32_0 = arith.constant 0 : i32
    return %arg1, %c0_i32 : i32, i32
  }
  func.func @transform_2(%arg0: i32, %arg1: i32) -> (i32, i32) {
    %c0_i32 = arith.constant 0 : i32
    %c0_i32_0 = arith.constant 0 : i32
    %c0_i32_1 = arith.constant 0 : i32
    return %c0_i32, %c0_i32_0 : i32, i32
  }
  func.func @transform_3(%arg0: i32, %arg1: i32) -> (i32, i32) {
    %c0_i32 = arith.constant 0 : i32
    %c0_i32_0 = arith.constant 0 : i32
    %c0_i32_1 = arith.constant 0 : i32
    return %c0_i32, %c0_i32_0 : i32, i32
  }
  func.func @transform_4(%arg0: i32, %arg1: i32) -> (i32, i32) {
    %c0_i32 = arith.constant 0 : i32
    %c0_i32_0 = arith.constant 0 : i32
    %c0_i32_1 = arith.constant 0 : i32
    return %c0_i32, %c0_i32_0 : i32, i32
  }
  func.func @transform_5(%arg0: i32, %arg1: i32) -> (i32, i32) {
    %c0_i32 = arith.constant 0 : i32
    %c0_i32_0 = arith.constant 0 : i32
    return %arg0, %c0_i32 : i32, i32
  }
}

</mosaic_0001>

<llo_original>
// kernel: tpu_custom_call.1
$region0: #{tpu_custom_call.1}
  #allocation0 [shape = 'u32[]', space=smem, size = 0x4, offset = 0x4, fixed_abs, tag = 'smem constant byte address 0x4 - core index']
  #allocation1 [shape = 'u32[144,128]{1,0:T(1,128)}', space=vmem, size = 0x12000, scoped, tag = 'internal scratch']
  #allocation2 [shape = 'f32[16,128]{1,0:T(8,128)}', space=vmem, size = 0x2000, scoped, tag = 'scratch operand']
  %s0 = inlined_call_operand.hbm [shape: bf16[16,384], index: 0, kind: input, shape index: {}]
  %s1 = inlined_call_operand.hbm [shape: bf16[384,128], index: 1, kind: input, shape index: {}]
  %s2 = inlined_call_operand.vmem [shape: f32[1,128], index: 2, kind: input, shape index: {}]
  %s3 = inlined_call_operand.hbm [shape: bf16[128,128], index: 3, kind: input, shape index: {}]
  %s4 = inlined_call_operand.vmem [shape: f32[1,128], index: 4, kind: input, shape index: {}]
  %s5 = inlined_call_operand.hbm [shape: bf16[16,128], index: 5, kind: output, shape index: {}]
  %s6 = sld [smem:[#allocation0]]
  $region73: #{tpu_custom_call.1} parent=0
    _
  %s8 = ssub.s32 1, %s6
  %s9 = scalar_select 0, %s8, %s6
  $region1: #{tpu_custom_call.1} parent=0
    #allocation3 [shape = 'u8[8192]{0}', space=vmem, size = 0x2000, scoped, tag = 'input window, operand 0']
    #allocation4 [shape = 's32[2]{0}', space=sflag, size = 0x8, scoped, tag = 'scoped memory for tpu_custom_call.1']
    #allocation5 [shape = 's32[2]{0}', space=sflag, size = 0x8, scoped, tag = 'scoped memory for tpu_custom_call.1']
    #allocation6 [shape = 'u8[65536]{0}', space=vmem, size = 0x10000, scoped, tag = 'input window, operand 1']
    #allocation7 [shape = 's32[2]{0}', space=sflag, size = 0x8, scoped, tag = 'scoped memory for tpu_custom_call.1']
    #allocation8 [shape = 'u8[32768]{0}', space=vmem, size = 0x8000, scoped, tag = 'input window, operand 3, single buffered']
    #allocation9 [shape = 'u8[4096]{0}', space=vmem, size = 0x1000, scoped, tag = 'output window, operand 0, single buffered']
    %10 = vsyncpa [#allocation4], 0
    %s11 = scalar_lea.sflag [#allocation4], 1
    %12 = vsyncpa %s11, 0
    %13 = vsyncpa [#allocation7], 0
    %s14 = scalar_lea.sflag [#allocation7], 1
    %15 = vsyncpa %s14, 0
    %16 = vsyncpa [#allocation5], 0
    loop: start=0, step=1, limit=5
    $region2: #{tpu_custom_call.1} parent=1 // loop_pre_header
      _
    $region3: #{tpu_custom_call.1} parent=1 // loop_header
      %s18 = sphi 0, %s22
      %p19 = scmp.ge.s32.totalorder %s18, 5
      %s25 = sphi 0, %s37
      %s26 = sphi 0, %s33
      %s27 = sphi 0, %s25
      %s28 = sphi 0, %s26
      %s29 = sphi 0, %s27
      %s30 = sphi 0, %s28
      %s42 = sphi 0, %s44
      %s45 = sphi 0, %s42
      %s46 = sphi 0, %s45
      %s62 = sphi 0, %s46
      %s68 = sphi 0, %s70
      %s71 = sphi 0, %s68
      %s72 = sphi 0, %s71
      %s88 = sphi 0, %s72
      %s92 = sphi 0, %s92
      %s94 = sphi 0, %s92
      %s95 = sphi 0, %s94
      %s109 = sphi 0, %s95
      %s113 = sphi 0, %s113
      %s115 = sphi 0, %s113
      %s116 = sphi 0, %s115
      %s130 = sphi 0, %s116
      %s134 = sphi 0, %s134
      %s136 = sphi 0, %s134
      %s137 = sphi 0, %s136
      %s151 = sphi 0, %s137
      %s157 = sphi 0, %s159
      %s160 = sphi 0, %s157
      %s161 = sphi 0, %s160
      %s177 = sphi 0, %s161
    $region4: #{tpu_custom_call.1} parent=1 // loop_header_branch
      %21 = sbr.rel (%p19) target = $region8
    $region5: #{tpu_custom_call.1} parent=1 // loop_body
      %s23 = ssub.s32 %s18, 1
      %s24 = ssub.s32 %s18, 2
      %s31 = sadd.s32 1, %s26
      %p32 = scmp.ge.s32.totalorder %s31, 3
      %s33 = scalar_select %p32, 0, %s31
      %s34 = sadd.s32 1, %s25
      %s35 = scalar_select %p32, %s34, %s25
      %p36 = scmp.ge.s32.totalorder %s35, 1
      %s37 = scalar_select %p36, 0, %s35
      %s38 = ssub.s32 %s25, %s37
      %s39 = ssub.s32 %s26, %s33
      %s40 = sor.u32 %s38, %s39
      %p41 = scmp.eq.s32.totalorder %s40, 0
      %s43 = sadd.s32 %s42, 1
      %s44 = scalar_select %p41, %s42, %s43
      %p47 = pneg %p41
      %p48 = scmp.eq.s32.totalorder %s18, 2
      %p49 = por %p47, %p48
      %p50 = scmp.ne.s32.totalorder %s42, %s45
      %p51 = scmp.eq.s32.totalorder %s18, 0
      %p52 = por %p50, %p51
      %p53 = scmp.ne.s32.totalorder %s42, %s45
      %p54 = scmp.eq.s32.totalorder %s23, 2
      %p55 = por %p53, %p54
      %p56 = scmp.ne.s32.totalorder %s45, %s46
      %p57 = scmp.eq.s32.totalorder %s23, 0
      %p58 = por %p56, %p57
      %p59 = scmp.ne.s32.totalorder %s45, %s46
      %p60 = scmp.eq.s32.totalorder %s24, 2
      %p61 = por %p59, %p60
      %p63 = scmp.ne.s32.totalorder %s46, %s62
      %p64 = scmp.eq.s32.totalorder %s24, 0
      %p65 = por %p63, %p64
      %s66 = ssub.s32 %s26, %s33
      %p67 = scmp.eq.s32.totalorder %s66, 0
      %s69 = sadd.s32 %s68, 1
      %s70 = scalar_select %p67, %s68, %s69
      %p73 = pneg %p67
      %p74 = scmp.eq.s32.totalorder %s18, 2
      %p75 = por %p73, %p74
      %p76 = scmp.ne.s32.totalorder %s68, %s71
      %p77 = scmp.eq.s32.totalorder %s18, 0
      %p78 = por %p76, %p77
      %p79 = scmp.ne.s32.totalorder %s68, %s71
      %p80 = scmp.eq.s32.totalorder %s23, 2
      %p81 = por %p79, %p80
      %p82 = scmp.ne.s32.totalorder %s71, %s72
      %p83 = scmp.eq.s32.totalorder %s23, 0
      %p84 = por %p82, %p83
      %p85 = scmp.ne.s32.totalorder %s71, %s72
      %p86 = scmp.eq.s32.totalorder %s24, 2
      %p87 = por %p85, %p86
      %p89 = scmp.ne.s32.totalorder %s72, %s88
      %p90 = scmp.eq.s32.totalorder %s24, 0
      %p91 = por %p89, %p90
      %s93 = sadd.s32 %s92, 1
      %p96 = scmp.eq.s32.totalorder %s18, 2
      %p97 = scmp.ne.s32.totalorder %s92, %s94
      %p98 = scmp.eq.s32.totalorder %s18, 0
      %p99 = por %p97, %p98
      %p100 = scmp.ne.s32.totalorder %s92, %s94
      %p101 = scmp.eq.s32.totalorder %s23, 2
      %p102 = por %p100, %p101
      %p103 = scmp.ne.s32.totalorder %s94, %s95
      %p104 = scmp.eq.s32.totalorder %s23, 0
      %p105 = por %p103, %p104
      %p106 = scmp.ne.s32.totalorder %s94, %s95
      %p107 = scmp.eq.s32.totalorder %s24, 2
      %p108 = por %p106, %p107
      %p110 = scmp.ne.s32.totalorder %s95, %s109
      %p111 = scmp.eq.s32.totalorder %s24, 0
      %p112 = por %p110, %p111
      %s114 = sadd.s32 %s113, 1
      %p117 = scmp.eq.s32.totalorder %s18, 2
      %p118 = scmp.ne.s32.totalorder %s113, %s115
      %p119 = scmp.eq.s32.totalorder %s18, 0
      %p120 = por %p118, %p119
      %p121 = scmp.ne.s32.totalorder %s113, %s115
      %p122 = scmp.eq.s32.totalorder %s23, 2
      %p123 = por %p121, %p122
      %p124 = scmp.ne.s32.totalorder %s115, %s116
      %p125 = scmp.eq.s32.totalorder %s23, 0
      %p126 = por %p124, %p125
      %p127 = scmp.ne.s32.totalorder %s115, %s116
      %p128 = scmp.eq.s32.totalorder %s24, 2
      %p129 = por %p127, %p128
      %p131 = scmp.ne.s32.totalorder %s116, %s130
      %p132 = scmp.eq.s32.totalorder %s24, 0
      %p133 = por %p131, %p132
      %s135 = sadd.s32 %s134, 1
      %p138 = scmp.eq.s32.totalorder %s18, 2
      %p139 = scmp.ne.s32.totalorder %s134, %s136
      %p140 = scmp.eq.s32.totalorder %s18, 0
      %p141 = por %p139, %p140
      %p142 = scmp.ne.s32.totalorder %s134, %s136
      %p143 = scmp.eq.s32.totalorder %s23, 2
      %p144 = por %p142, %p143
      %p145 = scmp.ne.s32.totalorder %s136, %s137
      %p146 = scmp.eq.s32.totalorder %s23, 0
      %p147 = por %p145, %p146
      %p148 = scmp.ne.s32.totalorder %s136, %s137
      %p149 = scmp.eq.s32.totalorder %s24, 2
      %p150 = por %p148, %p149
      %p152 = scmp.ne.s32.totalorder %s137, %s151
      %p153 = scmp.eq.s32.totalorder %s24, 0
      %p154 = por %p152, %p153
      %s155 = ssub.s32 %s25, %s37
      %p156 = scmp.eq.s32.totalorder %s155, 0
      %s158 = sadd.s32 %s157, 1
      %s159 = scalar_select %p156, %s157, %s158
      %p162 = pneg %p156
      %p163 = scmp.eq.s32.totalorder %s18, 2
      %p164 = por %p162, %p163
      %p165 = scmp.ne.s32.totalorder %s157, %s160
      %p166 = scmp.eq.s32.totalorder %s18, 0
      %p167 = por %p165, %p166
      %p168 = scmp.ne.s32.totalorder %s157, %s160
      %p169 = scmp.eq.s32.totalorder %s23, 2
      %p170 = por %p168, %p169
      %p171 = scmp.ne.s32.totalorder %s160, %s161
      %p172 = scmp.eq.s32.totalorder %s23, 0
      %p173 = por %p171, %p172
      %p174 = scmp.ne.s32.totalorder %s160, %s161
      %p175 = scmp.eq.s32.totalorder %s24, 2
      %p176 = por %p174, %p175
      %p178 = scmp.ne.s32.totalorder %s161, %s177
      %p179 = scmp.eq.s32.totalorder %s24, 0
      %p180 = por %p178, %p179
      %p181 = scmp.le.s32.totalorder 1, %s18
      %p182 = scmp.lt.s32.totalorder %s18, 4
      %p183 = pnand %p181, %p182
      %p184 = pneg %p183
      // Predicated region
      $region9: #{tpu_custom_call.1} parent=5 // pred_check
        _
      $region10: #{tpu_custom_call.1} parent=5 // pred_check_branch
        %186 = sbr.rel (%p183) target = $region12
      $region11: #{tpu_custom_call.1} parent=5 // pred_region
        %s187 = ssub.s32 %s18, 1
        // Predicated region
        $region13: #{tpu_custom_call.1} parent=11 // pred_check
          %p188 = pneg %p105
        $region14: #{tpu_custom_call.1} parent=11 // pred_check_branch
          %190 = sbr.rel (%p188) target = $region16
        $region15: #{tpu_custom_call.1} parent=11 // pred_region
          _
        $region16: #{tpu_custom_call.1} parent=11 // pred_fallthru
          _
        // Predicated region
        $region17: #{tpu_custom_call.1} parent=11 // pred_check
          %p191 = pneg %p126
        $region18: #{tpu_custom_call.1} parent=11 // pred_check_branch
          %193 = sbr.rel (%p191) target = $region20
        $region19: #{tpu_custom_call.1} parent=11 // pred_region
          %s195 = ssub.s32 1024, 1024
          %196 = vsyncadd [#allocation7], %s195
          %s197 = sshll.u32 [#allocation8], 4
          %s198 = int_to_ptr.vmem [resolvable:$true] %s197
          %203 = dma.hbm_to_vmem [thread:$0]  %s3, 1024, %s198, [#allocation7], 64, 64, 4
        $region20: #{tpu_custom_call.1} parent=11 // pred_fallthru
          _
        // Predicated region
        $region21: #{tpu_custom_call.1} parent=11 // pred_check
          %p204 = pneg %p147
        $region22: #{tpu_custom_call.1} parent=11 // pred_check_branch
          %206 = sbr.rel (%p204) target = $region24
        $region23: #{tpu_custom_call.1} parent=11 // pred_region
          _
        $region24: #{tpu_custom_call.1} parent=11 // pred_fallthru
          _
      $region12: #{tpu_custom_call.1} parent=5 // pred_fallthru
        _
      %p207 = scmp.lt.s32.totalorder %s18, 3
      // Predicated region
      $region25: #{tpu_custom_call.1} parent=5 // pred_check
        %p208 = pneg %p207
      $region26: #{tpu_custom_call.1} parent=5 // pred_check_branch
        %210 = sbr.rel (%p208) target = $region28
      $region27: #{tpu_custom_call.1} parent=5 // pred_region
        // Predicated region
        $region29: #{tpu_custom_call.1} parent=27 // pred_check
          %p211 = pneg %p52
        $region30: #{tpu_custom_call.1} parent=27 // pred_check_branch
          %213 = sbr.rel (%p211) target = $region32
        $region31: #{tpu_custom_call.1} parent=27 // pred_region
          %s214 = sand.u32 %s42, 1
          %s215 = scalar_lea.sflag [#allocation4], %s214
          %s216 = sand.u32 %s42, 1
          %s217 = smul.addr %s216, 8
          %s218 = scalar_lea.vmem [#allocation3], %s217
          %s219 = smul.u32 2, %s25
          %s221 = ssub.s32 128, 128
          %222 = vsyncadd %s215, %s221
          %s223 = smul.addr %s219, 3
          %s224 = sadd.s32 %s26, %s223
          %s225 = smul.addr %s224, 64
          %s226 = scalar_lea.hbm %s0, %s225
          %s227 = sshll.u32 %s218, 4
          %s228 = int_to_ptr.vmem [resolvable:$true] %s227
          %233 = dma.hbm_to_vmem [thread:$0]  %s226, 128, %s228, %s215, 192, 64, 4
        $region32: #{tpu_custom_call.1} parent=27 // pred_fallthru
          _
        // Predicated region
        $region33: #{tpu_custom_call.1} parent=27 // pred_check
          %p234 = pneg %p78
        $region34: #{tpu_custom_call.1} parent=27 // pred_check_branch
          %236 = sbr.rel (%p234) target = $region36
        $region35: #{tpu_custom_call.1} parent=27 // pred_region
          %s237 = sand.u32 %s18, 1
          %s238 = scalar_lea.sflag [#allocation7], %s237
          %s239 = sand.u32 %s68, 1
          %s240 = smul.addr %s239, 64
          %s241 = scalar_lea.vmem [#allocation6], %s240
          %s242 = smul.u32 16, %s26
          %s244 = ssub.s32 1024, 1024
          %245 = vsyncadd %s238, %s244
          %s246 = smul.addr %s242, 64
          %s247 = scalar_lea.hbm %s1, %s246
          %s248 = sshll.u32 %s241, 4
          %s249 = int_to_ptr.vmem [resolvable:$true] %s248
          %254 = dma.hbm_to_vmem [thread:$0]  %s247, 1024, %s249, %s238, 64, 64, 4
        $region36: #{tpu_custom_call.1} parent=27 // pred_fallthru
          _
      $region28: #{tpu_custom_call.1} parent=5 // pred_fallthru
        _
      %p255 = scmp.le.s32.totalorder 1, %s18
      %p256 = scmp.lt.s32.totalorder %s18, 4
      %p257 = pnand %p255, %p256
      %p258 = pneg %p257
      // Predicated region
      $region37: #{tpu_custom_call.1} parent=5 // pred_check
        _
      $region38: #{tpu_custom_call.1} parent=5 // pred_check_branch
        %260 = sbr.rel (%p257) target = $region40
      $region39: #{tpu_custom_call.1} parent=5 // pred_region
        %s261 = ssub.s32 %s18, 1
        %s262 = sand.u32 %s45, 1
        %s263 = scalar_lea.sflag [#allocation4], %s262
        %s264 = sand.u32 %s45, 1
        %s265 = smul.addr %s264, 8
        %s266 = scalar_lea.vmem [#allocation3], %s265
        // Predicated region
        $region41: #{tpu_custom_call.1} parent=39 // pred_check
          %p267 = pneg %p58
        $region42: #{tpu_custom_call.1} parent=39 // pred_check_branch
          %269 = sbr.rel (%p267) target = $region44
        $region43: #{tpu_custom_call.1} parent=39 // pred_region
          %270 = dma.done %s263, 128
        $region44: #{tpu_custom_call.1} parent=39 // pred_fallthru
          _
        %s271 = sand.u32 %s23, 1
        %s272 = scalar_lea.sflag [#allocation7], %s271
        %s273 = sand.u32 %s71, 1
        %s274 = smul.addr %s273, 64
        %s275 = scalar_lea.vmem [#allocation6], %s274
        // Predicated region
        $region45: #{tpu_custom_call.1} parent=39 // pred_check
          %p276 = pneg %p84
        $region46: #{tpu_custom_call.1} parent=39 // pred_check_branch
          %278 = sbr.rel (%p276) target = $region48
        $region47: #{tpu_custom_call.1} parent=39 // pred_region
          %279 = dma.done %s272, 1024
        $region48: #{tpu_custom_call.1} parent=39 // pred_fallthru
          _
        // Predicated region
        $region49: #{tpu_custom_call.1} parent=39 // pred_check
          %p280 = pneg %p126
        $region50: #{tpu_custom_call.1} parent=39 // pred_check_branch
          %282 = sbr.rel (%p280) target = $region52
        $region51: #{tpu_custom_call.1} parent=39 // pred_region
          %283 = dma.done [#allocation7], 1024
        $region52: #{tpu_custom_call.1} parent=39 // pred_fallthru
          _
        %s284 = sand.u32 %s45, 1
        %s285 = scalar_lea.sflag [#allocation4], %s284
        %s286 = sand.u32 %s45, 1
        %s287 = smul.addr %s286, 8
        %s288 = scalar_lea.vmem [#allocation3], %s287
        %p289 = pneg %p58
        %p290 = pneg %p55
        %s291 = sand.u32 %s23, 1
        %s292 = scalar_lea.sflag [#allocation7], %s291
        %s293 = sand.u32 %s71, 1
        %s294 = smul.addr %s293, 64
        %s295 = scalar_lea.vmem [#allocation6], %s294
        %p296 = pneg %p84
        %p297 = pneg %p81
        %p298 = pneg %p105
        %p299 = pneg %p102
        %p300 = pneg %p126
        %p301 = pneg %p123
        %p302 = pneg %p147
        %p303 = pneg %p144
        %p304 = pneg %p173
        %p305 = pneg %p170
        %s306 = smul.u32 2, %s27
        %s307 = smul.u32 16, %s28
        %s308 = smul.u32 2, %s27
        %p310 = scmp.eq.s32.totalorder %s28, 0
        // Predicated region
        $region53: #{tpu_custom_call.1} parent=39 // pred_check
          %p311 = pneg %p310
        $region54: #{tpu_custom_call.1} parent=39 // pred_check_branch
          %313 = sbr.rel (%p311) target = $region56
        $region55: #{tpu_custom_call.1} parent=39 // pred_region
          %314 = vst [vmem:[#allocation2] sm:$0xff] 0.0
          %315 = vst [vmem:[#allocation2 + $0x8] sm:$0xff] 0.0
        $region56: #{tpu_custom_call.1} parent=39 // pred_fallthru
          _
        %v316 = vld [vmem:[#allocation2] sm:$0xff]
        %v317 = vld [vmem:[#allocation2 + $0x8] sm:$0xff]
        %v318 = vld [vmem:[%s266] sm:$0xf]
        %v319 = vld [vmem:[%s266 + $0x4] sm:$0xf]
        %v320 = vld [vmem:[%s275] sm:$0xf]
        %v321 = vld [vmem:[%s275 + $0x4] sm:$0xf]
        %v322 = vld [vmem:[%s275 + $0x8] sm:$0xf]
        %v323 = vld [vmem:[%s275 + $0xc] sm:$0xf]
        %v324 = vld [vmem:[%s275 + $0x10] sm:$0xf]
        %v325 = vld [vmem:[%s275 + $0x14] sm:$0xf]
        %v326 = vld [vmem:[%s275 + $0x18] sm:$0xf]
        %v327 = vld [vmem:[%s275 + $0x1c] sm:$0xf]
        %v328 = vld [vmem:[%s275 + $0x20] sm:$0xf]
        %v329 = vld [vmem:[%s275 + $0x24] sm:$0xf]
        %v330 = vld [vmem:[%s275 + $0x28] sm:$0xf]
        %v331 = vld [vmem:[%s275 + $0x2c] sm:$0xf]
        %v332 = vld [vmem:[%s275 + $0x30] sm:$0xf]
        %v333 = vld [vmem:[%s275 + $0x34] sm:$0xf]
        %v334 = vld [vmem:[%s275 + $0x38] sm:$0xf]
        %v335 = vld [vmem:[%s275 + $0x3c] sm:$0xf]
        %v338 = vunpack.c.l.b16 %v318
        %v339 = vunpack.c.l.b16 %v319
        %v340 = vpack.c.b16 %v339, %v338
        %v358 = vunpack.c.l.b16 %v320
        %v359 = vunpack.c.l.b16 %v321
        %v360 = vunpack.c.l.b16 %v322
        %v361 = vunpack.c.l.b16 %v323
        %v362 = vunpack.c.l.b16 %v324
        %v363 = vunpack.c.l.b16 %v325
        %v364 = vunpack.c.l.b16 %v326
        %v365 = vunpack.c.l.b16 %v327
        %v366 = vunpack.c.l.b16 %v328
        %v367 = vunpack.c.l.b16 %v329
        %v368 = vunpack.c.l.b16 %v330
        %v369 = vunpack.c.l.b16 %v331
        %v370 = vunpack.c.l.b16 %v332
        %v371 = vunpack.c.l.b16 %v333
        %v372 = vunpack.c.l.b16 %v334
        %v373 = vunpack.c.l.b16 %v335
        %v374 = vpack.c.b16 %v359, %v358
        %v375 = vpack.c.b16 %v361, %v360
        %v376 = vpack.c.b16 %v363, %v362
        %v377 = vpack.c.b16 %v365, %v364
        %v378 = vpack.c.b16 %v367, %v366
        %v379 = vpack.c.b16 %v369, %v368
        %v380 = vpack.c.b16 %v371, %v370
        %v381 = vpack.c.b16 %v373, %v372
        %390 = vmatprep.subr.bf16.mxu0 0
        %391 = vmatpush1.bf16.msra.mxu0 %v374
        %392 = vmatprep.subr.bf16.mxu0 0
        %393 = vmatpush1.bf16.msra.mxu0 %v375
        %394 = vmatprep.subr.bf16.mxu0 0
        %395 = vmatpush1.bf16.msra.mxu0 %v376
        %396 = vmatprep.subr.bf16.mxu0 0
        %397 = vmatpush1.bf16.msra.mxu0 %v377
        %398 = vmatprep.subr.bf16.mxu0 0
        %399 = vmatpush1.bf16.msra.mxu0 %v378
        %400 = vmatprep.subr.bf16.mxu0 0
        %401 = vmatpush1.bf16.msra.mxu0 %v379
        %402 = vmatprep.subr.bf16.mxu0 0
        %403 = vmatpush1.bf16.msra.mxu0 %v380
        %404 = vmatprep.subr.bf16.mxu0 0
        %405 = vmatpush1.bf16.msra.mxu0 %v381
        %406 = vmatprep.subr.bf16.mxu0 0
        %407 = vmatpush1.bf16.msra.mxu0 0
        %408 = vmatprep.subr.bf16.mxu0 0
        %409 = vmatpush1.bf16.msra.mxu0 0
        %410 = vmatprep.subr.bf16.mxu0 0
        %411 = vmatpush1.bf16.msra.mxu0 0
        %412 = vmatprep.subr.bf16.mxu0 0
        %413 = vmatpush1.bf16.msra.mxu0 0
        %414 = vmatprep.subr.bf16.mxu0 0
        %415 = vmatpush1.bf16.msra.mxu0 0
        %416 = vmatprep.subr.bf16.mxu0 0
        %417 = vmatpush1.bf16.msra.mxu0 0
        %418 = vmatprep.subr.bf16.mxu0 0
        %419 = vmatpush1.bf16.msra.mxu0 0
        %420 = vmatprep.subr.bf16.mxu0 0
        %421 = vmatpush1.bf16.msra.mxu0 0
        %422 = vmatprep.mubr.bf16.mxu0 0
        %423 = vmatmul.mubr.bf16.gmra.mrb[0].mxu0 %v340
        %v424 = vpop.f32.mrb[0].mxu0
        %v425 = vadd.f32 0.0, %v424
        %v426 = vpop.f32.mrb[0].mxu0
        %v427 = vpop.f32.mrb[0].mxu0
        %v428 = vadd.f32 0.0, %v427
        %v429 = vpop.f32.mrb[0].mxu0
        %430 = vdwg.mxu0
        %v431 = vadd.f32 %v316, %v425
        %v432 = vadd.f32 %v317, %v428
        %433 = vst [vmem:[#allocation2] sm:$0xff] %v431
        %434 = vst [vmem:[#allocation2 + $0x8] sm:$0xff] %v432
        %p435 = scmp.eq.s32.totalorder %s28, 2
        // Predicated region
        $region57: #{tpu_custom_call.1} parent=39 // pred_check
          %p436 = pneg %p435
        $region58: #{tpu_custom_call.1} parent=39 // pred_check_branch
          %438 = sbr.rel (%p436) target = $region60
        $region59: #{tpu_custom_call.1} parent=39 // pred_region
          %v439 = vld [vmem:[#allocation2] sm:$0xff]
          %v440 = vld [vmem:[#allocation2 + $0x8] sm:$0xff]
          %v441 = vld [vmem:[%s2] sm:$0x1]
          %v443 = vlaneseq
          %v444 = vshrl.u32 %v443, 7
          %v445 = vsub.s32 0, %v444
          %v446 = vrot.slane %v441, %v445
          %v448 = vadd.f32 %v439, %v446
          %v449 = vadd.f32 %v440, %v446
          %v450 = vmax.f32 %v448, 0.0
          %v451 = vmax.f32 %v449, 0.0
          %v452 = vpack.c.bf16 %v451, %v450
          %v453 = vld [vmem:[#allocation8] sm:$0xf]
          %v454 = vld [vmem:[#allocation8 + $0x4] sm:$0xf]
          %v455 = vld [vmem:[#allocation8 + $0x8] sm:$0xf]
          %v456 = vld [vmem:[#allocation8 + $0xc] sm:$0xf]
          %v457 = vld [vmem:[#allocation8 + $0x10] sm:$0xf]
          %v458 = vld [vmem:[#allocation8 + $0x14] sm:$0xf]
          %v459 = vld [vmem:[#allocation8 + $0x18] sm:$0xf]
          %v460 = vld [vmem:[#allocation8 + $0x1c] sm:$0xf]
          %v461 = vld [vmem:[#allocation8 + $0x20] sm:$0xf]
          %v462 = vld [vmem:[#allocation8 + $0x24] sm:$0xf]
          %v463 = vld [vmem:[#allocation8 + $0x28] sm:$0xf]
          %v464 = vld [vmem:[#allocation8 + $0x2c] sm:$0xf]
          %v465 = vld [vmem:[#allocation8 + $0x30] sm:$0xf]
          %v466 = vld [vmem:[#allocation8 + $0x34] sm:$0xf]
          %v467 = vld [vmem:[#allocation8 + $0x38] sm:$0xf]
          %v468 = vld [vmem:[#allocation8 + $0x3c] sm:$0xf]
          %v469 = vld [vmem:[%s4] sm:$0x1]
          %v471 = vlaneseq
          %v472 = vshrl.u32 %v471, 7
          %v473 = vsub.s32 0, %v472
          %v474 = vrot.slane %v469, %v473
          %v492 = vunpack.c.l.b16 %v453
          %v493 = vunpack.c.l.b16 %v454
          %v494 = vunpack.c.l.b16 %v455
          %v495 = vunpack.c.l.b16 %v456
          %v496 = vunpack.c.l.b16 %v457
          %v497 = vunpack.c.l.b16 %v458
          %v498 = vunpack.c.l.b16 %v459
          %v499 = vunpack.c.l.b16 %v460
          %v500 = vunpack.c.l.b16 %v461
          %v501 = vunpack.c.l.b16 %v462
          %v502 = vunpack.c.l.b16 %v463
          %v503 = vunpack.c.l.b16 %v464
          %v504 = vunpack.c.l.b16 %v465
          %v505 = vunpack.c.l.b16 %v466
          %v506 = vunpack.c.l.b16 %v467
          %v507 = vunpack.c.l.b16 %v468
          %v508 = vpack.c.b16 %v493, %v492
          %v509 = vpack.c.b16 %v495, %v494
          %v510 = vpack.c.b16 %v497, %v496
          %v511 = vpack.c.b16 %v499, %v498
          %v512 = vpack.c.b16 %v501, %v500
          %v513 = vpack.c.b16 %v503, %v502
          %v514 = vpack.c.b16 %v505, %v504
          %v515 = vpack.c.b16 %v507, %v506
          %524 = vmatprep.subr.bf16.mxu0 0
          %525 = vmatpush1.bf16.msra.mxu0 %v508
          %526 = vmatprep.subr.bf16.mxu0 0
          %527 = vmatpush1.bf16.msra.mxu0 %v509
          %528 = vmatprep.subr.bf16.mxu0 0
          %529 = vmatpush1.bf16.msra.mxu0 %v510
          %530 = vmatprep.subr.bf16.mxu0 0
          %531 = vmatpush1.bf16.msra.mxu0 %v511
          %532 = vmatprep.subr.bf16.mxu0 0
          %533 = vmatpush1.bf16.msra.mxu0 %v512
          %534 = vmatprep.subr.bf16.mxu0 0
          %535 = vmatpush1.bf16.msra.mxu0 %v513
          %536 = vmatprep.subr.bf16.mxu0 0
          %537 = vmatpush1.bf16.msra.mxu0 %v514
          %538 = vmatprep.subr.bf16.mxu0 0
          %539 = vmatpush1.bf16.msra.mxu0 %v515
          %540 = vmatprep.subr.bf16.mxu0 0
          %541 = vmatpush1.bf16.msra.mxu0 0
          %542 = vmatprep.subr.bf16.mxu0 0
          %543 = vmatpush1.bf16.msra.mxu0 0
          %544 = vmatprep.subr.bf16.mxu0 0
          %545 = vmatpush1.bf16.msra.mxu0 0
          %546 = vmatprep.subr.bf16.mxu0 0
          %547 = vmatpush1.bf16.msra.mxu0 0
          %548 = vmatprep.subr.bf16.mxu0 0
          %549 = vmatpush1.bf16.msra.mxu0 0
          %550 = vmatprep.subr.bf16.mxu0 0
          %551 = vmatpush1.bf16.msra.mxu0 0
          %552 = vmatprep.subr.bf16.mxu0 0
          %553 = vmatpush1.bf16.msra.mxu0 0
          %554 = vmatprep.subr.bf16.mxu0 0
          %555 = vmatpush1.bf16.msra.mxu0 0
          %556 = vmatprep.mubr.bf16.mxu0 0
          %557 = vmatmul.mubr.bf16.gmra.mrb[0].mxu0 %v452
          %v558 = vpop.f32.mrb[0].mxu0
          %v559 = vadd.f32 %v474, %v558
          %v560 = vpop.f32.mrb[0].mxu0
          %v561 = vpop.f32.mrb[0].mxu0
          %v562 = vadd.f32 %v474, %v561
          %v563 = vpop.f32.mrb[0].mxu0
          %564 = vdwg.mxu0
          %v565 = vpack.c.bf16 %v562, %v559
          %v567 = vunpack.c.l.b16 %v565
          %v568 = vunpack.c.h.b16 %v565
          %v569 = vpack.c.b16 %v567, %v567
          %v570 = vpack.c.b16 %v568, %v568
          %573 = vst [vmem:[#allocation9] sm:$0xf] %v569
          %574 = vst [vmem:[#allocation9 + $0x4] sm:$0xf] %v570
        $region60: #{tpu_custom_call.1} parent=39 // pred_fallthru
          _
        // Predicated region
        $region61: #{tpu_custom_call.1} parent=39 // pred_check
          %p575 = pneg %p170
        $region62: #{tpu_custom_call.1} parent=39 // pred_check_branch
          %577 = sbr.rel (%p575) target = $region64
        $region63: #{tpu_custom_call.1} parent=39 // pred_region
          %s578 = smul.u32 2, %s27
          %s580 = ssub.s32 128, 128
          %581 = vsyncadd [#allocation5], %s580
          %s582 = smul.addr %s578, 64
          %s583 = scalar_lea.hbm %s5, %s582
          %s584 = sshll.u32 [#allocation9], 4
          %s585 = int_to_ptr.vmem [resolvable:$true] %s584
          %590 = dma.vmem_to_hbm [thread:$0]  %s585, 128, %s583, [#allocation5], 64, 64, 4
        $region64: #{tpu_custom_call.1} parent=39 // pred_fallthru
          _
        // Predicated region
        $region65: #{tpu_custom_call.1} parent=39 // pred_check
          %p591 = pneg %p170
        $region66: #{tpu_custom_call.1} parent=39 // pred_check_branch
          %593 = sbr.rel (%p591) target = $region68
        $region67: #{tpu_custom_call.1} parent=39 // pred_region
          %594 = dma.done [#allocation5], 128
        $region68: #{tpu_custom_call.1} parent=39 // pred_fallthru
          _
      $region40: #{tpu_custom_call.1} parent=5 // pred_fallthru
        _
      %p595 = scmp.le.s32.totalorder 2, %s18
      // Predicated region
      $region69: #{tpu_custom_call.1} parent=5 // pred_check
        %p596 = pneg %p595
      $region70: #{tpu_custom_call.1} parent=5 // pred_check_branch
        %598 = sbr.rel (%p596) target = $region72
      $region71: #{tpu_custom_call.1} parent=5 // pred_region
        %s599 = ssub.s32 %s18, 2
      $region72: #{tpu_custom_call.1} parent=5 // pred_fallthru
        _
    $region6: #{tpu_custom_call.1} parent=1 // loop_footer
      %s22 = sadd.s32 1, %s18
    $region7: #{tpu_custom_call.1} parent=1 // loop_footer_branch
      %17 = sbr.rel target = $region3
    $region8: #{tpu_custom_call.1} parent=1 // loop_exit
      _
    %600 = vsyncpa [#allocation4], 1
    %s601 = scalar_lea.sflag [#allocation4], 1
    %602 = vsyncpa %s601, 1
    %603 = vsyncpa [#allocation7], 1
    %s604 = scalar_lea.sflag [#allocation7], 1
    %605 = vsyncpa %s604, 1
    %606 = vsyncpa [#allocation5], 1
    %s607 = scalar_lea.sflag [#allocation5], 1
    %608 = vsyncpa %s607, 1

</llo_original>
